<compile_context>
chip_gen: v7x
topology: tpu7x:2x2x1
jax: 0.10.0
libtpu: 0.0.40
codegen_flags: <defaults>
</compile_context>

<pallas_src>
import jax
import jax.numpy as jnp
from jax.experimental import pallas as pl
from jax.experimental.pallas import tpu as pltpu


def _round_up(x, m):
    return (x + m - 1) // m * m


def _cdiv(a, b):
    return -(-a // b)


def _vmem_capacity_bytes():
    """Best-effort query of per-core VMEM capacity; conservative fallback (v7x-sized)."""
    try:
        info = pltpu.get_tpu_info()
        cap = getattr(info, "vmem_capacity_bytes", None)
        if cap:
            return int(cap)
    except Exception:
        pass
    return 64 * 1024 * 1024


def _choose_tile_n(n_rows, d, x_itemsize, x_tile_target_bytes):
    """Row-tile size: byte-targeted, sublane-aligned, and split >=2 ways when possible."""
    # Sublane multiple for the packed dtype: 8 (f32), 16 (bf16/f16), 32 (int8/fp8).
    mult = max(8, 32 // max(1, x_itemsize))
    # Rows such that one streamed x tile is ~x_tile_target_bytes.
    rows_by_bytes = max(mult, (x_tile_target_bytes // max(1, d * x_itemsize)) // mult * mult)
    # Cap so there are at least 2 tiles when possible (feeds both v7x TensorCores).
    rows_for_two_tiles = _round_up(_cdiv(n_rows, 2), mult)
    tile_n = min(rows_by_bytes, rows_for_two_tiles)
    if tile_n >= n_rows:
        return n_rows  # single, full-extent tile: always layout-legal for any n_rows
    return tile_n


def _dense_network_kernel(x_ref, w1_ref, b1_ref, w2_ref, b2_ref, w3_ref, b3_ref, o_ref):
    x = x_ref[...]
    # bf16 fast path: if weights are bf16 and x is wider, feed the MXU bf16 operands.
    # (Cast is a VPU op hidden under the x DMA; accumulation below stays f32.)
    if w1_ref.dtype == jnp.bfloat16 and x.dtype != jnp.bfloat16:
        x = x.astype(jnp.bfloat16)

    # Layer 1: Linear(D, D//4) + ReLU  (MXU, f32 accumulation)
    h1 = jnp.dot(x, w1_ref[...], preferred_element_type=jnp.float32)
    h1 = jnp.maximum(h1 + b1_ref[...].astype(jnp.float32), 0.0)

    # Layer 2: Linear(D//4, D//16) + ReLU  (MXU, f32 accumulation)
    h2 = jnp.dot(h1.astype(w2_ref.dtype), w2_ref[...], preferred_element_type=jnp.float32)
    h2 = jnp.maximum(h2 + b2_ref[...].astype(jnp.float32), 0.0)

    # Layer 3: Linear(D//16, 1). Output width 1 -> broadcast-multiply + lane reduce
    # on the VPU/XLU instead of a mostly-wasted MXU pass.
    w3_row = w3_ref[...].astype(jnp.float32)                     # (1, d2)
    out = jnp.sum(h2 * w3_row, axis=-1, keepdims=True) + b3_ref[...].astype(jnp.float32)
    o_ref[...] = out.astype(o_ref.dtype)


def dense_network_forward(x, params, *, out_dtype=jnp.float32):
    """Equivalent of DenseNetwork.forward.

    x: any shape whose total size is a multiple of embedding_dim; reshaped to (-1, D).
    params: dict with w1 (D, D//4), b1 (1, D//4), w2 (D//4, D//16), b2 (1, D//16),
            w3 (D//16, 1), b3 (1, 1).  Returns (N, 1).

    Note: when x / weights are bf16, layer-1/2 matmuls run on the bf16 MXU path with f32
    accumulation (the pure-f32 reference can differ slightly at bf16 input precision).
    """
    w1, b1 = params["w1"], params["b1"]
    w2, b2 = params["w2"], params["b2"]
    w3, b3 = params["w3"], params["b3"]
    D, d1 = w1.shape
    d2 = w2.shape[1]

    # Flatten leading dims; keep the caller's dtype (no extra HBM copy of x).
    x2d = x.reshape((-1, D))
    N = x2d.shape[0]
    x_itemsize = jnp.dtype(x2d.dtype).itemsize

    # Per-generation byte targets derived from VMEM capacity.
    vmem_cap = _vmem_capacity_bytes()
    x_tile_target = max(2 * 1024 * 1024, vmem_cap // 16)       # ~8 MiB v5e/v6e, ~4 MiB v7x
    vmem_limit = int(min(100 * 1024 * 1024,
                         max(32 * 1024 * 1024, (vmem_cap * 3) // 4)))  # ~96 MiB / ~48 MiB

    tile_n = _choose_tile_n(N, D, x_itemsize, x_tile_target)
    num_tiles = _cdiv(N, tile_n)

    # Present w3 as a (1, d2) row so layer 3 is a broadcast-multiply + reduce.
    w3_row = w3.reshape((1, d2))
    b3_2d = b3.reshape((1, 1))

    w_bytes = jnp.dtype(w1.dtype).itemsize
    cost = pl.CostEstimate(
        flops=int(2 * N * (D * d1 + d1 * d2 + d2)),
        transcendentals=0,
        bytes_accessed=int(
            N * D * x_itemsize
            + (D * d1 + d1 + d1 * d2 + d2 + d2 + 1) * w_bytes
            + N * jnp.dtype(out_dtype).itemsize
        ),
    )

    def build(single_buffer_weights):
        def resident(a):
            nd = a.ndim
            idx = lambda i, _nd=nd: (0,) * _nd
            if single_buffer_weights:
                # Constant index_map -> never re-DMA'd; one buffer is enough (halves the
                # resident-weight VMEM footprint, which matters on v7x's 64 MiB).
                return pl.BlockSpec(a.shape, idx, pipeline_mode=pl.Buffered(1))
            return pl.BlockSpec(a.shape, idx)

        return pl.pallas_call(
            _dense_network_kernel,
            out_shape=jax.ShapeDtypeStruct((N, 1), out_dtype),
            grid=(num_tiles,),
            in_specs=[
                # x: streamed, auto double-buffered; ragged last block is clipped by Pallas.
                pl.BlockSpec((tile_n, D), lambda i: (i, 0)),
                resident(w1), resident(b1),                    # weights/biases: VMEM-resident
                resident(w2), resident(b2),
                resident(w3_row), resident(b3_2d),
            ],
            out_specs=pl.BlockSpec((tile_n, 1), lambda i: (i, 0)),
            compiler_params=pltpu.CompilerParams(
                dimension_semantics=("parallel",),   # shard row tiles across TCs on v7x
                vmem_limit_bytes=vmem_limit,
            ),
            cost_estimate=cost,
        )

    args = (x2d, w1, b1, w2, b2, w3_row, b3_2d)
    try:
        return build(single_buffer_weights=True)(*args)
    except Exception:
        # Fallback if this jax/libtpu build rejects Buffered(1) single-buffering.
        return build(single_buffer_weights=False)(*args)


def init_dense_network_params(key, embedding_dim, dtype=jnp.float32):
    """Deterministic init matching nn.Linear default U(-1/sqrt(fan_in), 1/sqrt(fan_in))."""
    d1 = embedding_dim // 4
    d2 = embedding_dim // 16
    ks = jax.random.split(key, 6)

    def lin(kw, kb, fan_in, fan_out):
        bound = 1.0 / jnp.sqrt(fan_in)
        w = jax.random.uniform(kw, (fan_in, fan_out), jnp.float32, -bound, bound).astype(dtype)
        b = jax.random.uniform(kb, (1, fan_out), jnp.float32, -bound, bound).astype(dtype)
        return w, b

    w1, b1 = lin(ks[0], ks[1], embedding_dim, d1)
    w2, b2 = lin(ks[2], ks[3], d1, d2)
    w3, b3 = lin(ks[4], ks[5], d2, 1)
    return {"w1": w1, "b1": b1, "w2": w2, "b2": b2, "w3": w3, "b3": b3}


def _reference_forward(x, params):
    D = params["w1"].shape[0]
    x2d = x.reshape((-1, D)).astype(jnp.float32)
    h1 = jnp.maximum(x2d @ params["w1"].astype(jnp.float32) + params["b1"].astype(jnp.float32), 0.0)
    h2 = jnp.maximum(h1 @ params["w2"].astype(jnp.float32) + params["b2"].astype(jnp.float32), 0.0)
    return h2 @ params["w3"].astype(jnp.float32) + params["b3"].astype(jnp.float32)


if __name__ == "__main__":
    key = jax.random.PRNGKey(0)
    k_p1, k_x1, k_p2, k_x2, k_p3, k_x3 = jax.random.split(key, 6)

    # Case 1: embedding_dim=32 -> hidden dims 8, 2, output 1; x reshaped to (8, 32).
    embedding_dim = 32
    batch, seq = 2, 4
    params = init_dense_network_params(k_p1, embedding_dim)
    x = jax.random.normal(k_x1, (batch, seq, embedding_dim), jnp.float32)

    out = jax.block_until_ready(dense_network_forward(x, params))
    ref = _reference_forward(x, params)
    assert out.shape == (batch * seq, 1), out.shape
    assert jnp.allclose(out, ref, atol=1e-5, rtol=1e-5), "mismatch vs reference (case 1)"

    # Case 2: N not a multiple of 8 (single full-extent tile path, no padding anywhere).
    embedding_dim2 = 64
    params2 = init_dense_network_params(k_p2, embedding_dim2)
    x2 = jax.random.normal(k_x2, (5, embedding_dim2), jnp.float32)

    out2 = jax.block_until_ready(dense_network_forward(x2, params2))
    ref2 = _reference_forward(x2, params2)
    assert out2.shape == (5, 1), out2.shape
    assert jnp.allclose(out2, ref2, atol=1e-5, rtol=1e-5), "mismatch vs reference (case 2)"

    # Case 3: bf16 weights + bf16 x, N=37 -> exercises the bf16 MXU path, the >=2-tile
    # split, and the ragged (clipped) last block with no wrapper-side padding.
    embedding_dim3 = 256
    params3 = init_dense_network_params(k_p3, embedding_dim3, dtype=jnp.bfloat16)
    x3 = jax.random.normal(k_x3, (37, embedding_dim3), jnp.float32).astype(jnp.bfloat16)

    out3 = jax.block_until_ready(dense_network_forward(x3, params3))
    ref3 = _reference_forward(x3, params3)
    assert out3.shape == (37, 1), out3.shape
    assert jnp.allclose(out3, ref3, atol=1e-2, rtol=1e-2), "mismatch vs reference (case 3, bf16)"

    print("KERNEL_OK")
</pallas_src>

<mosaic_0001>
module attributes {stable_mosaic.version = 11 : i64} {
  func.func @_dense_network_kernel(%arg0: i32, %arg1: memref<8x32xf32, #tpu.memory_space<vmem>>, %arg2: memref<32x8xf32, #tpu.memory_space<vmem>>, %arg3: memref<1x8xf32, #tpu.memory_space<vmem>>, %arg4: memref<8x2xf32, #tpu.memory_space<vmem>>, %arg5: memref<1x2xf32, #tpu.memory_space<vmem>>, %arg6: memref<1x2xf32, #tpu.memory_space<vmem>>, %arg7: memref<1x1xf32, #tpu.memory_space<vmem>>, %arg8: memref<8x1xf32, #tpu.memory_space<vmem>>) attributes {dimension_semantics = [#tpu.dimension_semantics<parallel>], iteration_bounds = array<i64: 1>, scalar_prefetch = 0 : i64, scratch_operands = 0 : i64, tpu.core_type = #tpu.core_type<tc>, window_params = [{transform_indices = @transform_0, window_bounds = array<i64: 8, 32>}, {pipeline_mode = #tpu.pipeline_mode<synchronous>, transform_indices = @transform_1, window_bounds = array<i64: 32, 8>}, {pipeline_mode = #tpu.pipeline_mode<synchronous>, transform_indices = @transform_2, window_bounds = array<i64: 1, 8>}, {pipeline_mode = #tpu.pipeline_mode<synchronous>, transform_indices = @transform_3, window_bounds = array<i64: 8, 2>}, {pipeline_mode = #tpu.pipeline_mode<synchronous>, transform_indices = @transform_4, window_bounds = array<i64: 1, 2>}, {pipeline_mode = #tpu.pipeline_mode<synchronous>, transform_indices = @transform_5, window_bounds = array<i64: 1, 2>}, {pipeline_mode = #tpu.pipeline_mode<synchronous>, transform_indices = @transform_6, window_bounds = array<i64: 1, 1>}, {transform_indices = @transform_7, window_bounds = array<i64: 8, 1>}]} {
    %c0 = arith.constant 0 : index
    %c0_0 = arith.constant 0 : index
    %0 = vector.load %arg1[%c0, %c0_0] : memref<8x32xf32, #tpu.memory_space<vmem>>, vector<8x32xf32>
    %c0_1 = arith.constant 0 : index
    %c0_2 = arith.constant 0 : index
    %1 = vector.load %arg2[%c0_1, %c0_2] : memref<32x8xf32, #tpu.memory_space<vmem>>, vector<32x8xf32>
    %cst = arith.constant dense<0.000000e+00> : vector<8x8xf32>
    %2 = tpu.matmul %0, %1, %cst {dimension_numbers = #tpu.dot_dimension_numbers<[1], [0], [0], [1], [0, 0, 1, 1], [], []>} : vector<8x32xf32>, vector<32x8xf32>, vector<8x8xf32> -> vector<8x8xf32>
    %c0_3 = arith.constant 0 : index
    %c0_4 = arith.constant 0 : index
    %3 = vector.load %arg3[%c0_3, %c0_4] : memref<1x8xf32, #tpu.memory_space<vmem>>, vector<1x8xf32>
    %4 = vector.broadcast %3 : vector<1x8xf32> to vector<8x8xf32>
    %5 = arith.addf %2, %4 : vector<8x8xf32>
    %cst_5 = arith.constant 0.000000e+00 : f32
    %6 = vector.broadcast %cst_5 : f32 to vector<8x8xf32>
    %7 = arith.maximumf %5, %6 : vector<8x8xf32>
    %c0_6 = arith.constant 0 : index
    %c0_7 = arith.constant 0 : index
    %8 = vector.load %arg4[%c0_6, %c0_7] : memref<8x2xf32, #tpu.memory_space<vmem>>, vector<8x2xf32>
    %cst_8 = arith.constant dense<0.000000e+00> : vector<8x2xf32>
    %9 = tpu.matmul %7, %8, %cst_8 {dimension_numbers = #tpu.dot_dimension_numbers<[1], [0], [0], [1], [0, 0, 1, 1], [], []>} : vector<8x8xf32>, vector<8x2xf32>, vector<8x2xf32> -> vector<8x2xf32>
    %c0_9 = arith.constant 0 : index
    %c0_10 = arith.constant 0 : index
    %10 = vector.load %arg5[%c0_9, %c0_10] : memref<1x2xf32, #tpu.memory_space<vmem>>, vector<1x2xf32>
    %11 = vector.broadcast %10 : vector<1x2xf32> to vector<8x2xf32>
    %12 = arith.addf %9, %11 : vector<8x2xf32>
    %cst_11 = arith.constant 0.000000e+00 : f32
    %13 = vector.broadcast %cst_11 : f32 to vector<8x2xf32>
    %14 = arith.maximumf %12, %13 : vector<8x2xf32>
    %c0_12 = arith.constant 0 : index
    %c0_13 = arith.constant 0 : index
    %15 = vector.load %arg6[%c0_12, %c0_13] : memref<1x2xf32, #tpu.memory_space<vmem>>, vector<1x2xf32>
    %16 = vector.broadcast %15 : vector<1x2xf32> to vector<8x2xf32>
    %17 = arith.mulf %14, %16 : vector<8x2xf32>
    %cst_14 = arith.constant dense<0.000000e+00> : vector<8xf32>
    %18 = vector.multi_reduction <add>, %17, %cst_14 [1] : vector<8x2xf32> to vector<8xf32>
    %19 = vector.shape_cast %18 : vector<8xf32> to vector<8x1xf32>
    %c0_15 = arith.constant 0 : index
    %c0_16 = arith.constant 0 : index
    %20 = vector.load %arg7[%c0_15, %c0_16] : memref<1x1xf32, #tpu.memory_space<vmem>>, vector<1x1xf32>
    %21 = vector.broadcast %20 : vector<1x1xf32> to vector<8x1xf32>
    %22 = arith.addf %19, %21 : vector<8x1xf32>
    %c0_17 = arith.constant 0 : index
    %c0_18 = arith.constant 0 : index
    %23 = vector.load %arg8[%c0_17, %c0_18] : memref<8x1xf32, #tpu.memory_space<vmem>>, vector<8x1xf32>
    tpu.vector_store %arg8[%c0_17, %c0_18], %22 {strides = array<i32>} : memref<8x1xf32, #tpu.memory_space<vmem>>, vector<8x1xf32>,
    return
  }
  func.func @transform_0(%arg0: i32) -> (i32, i32) {
    %c0_i32 = arith.constant 0 : i32
    %c0_i32_0 = arith.constant 0 : i32
    return %arg0, %c0_i32 : i32, i32
  }
  func.func @transform_1(%arg0: i32) -> (i32, i32) {
    %c0_i32 = arith.constant 0 : i32
    %c0_i32_0 = arith.constant 0 : i32
    %c0_i32_1 = arith.constant 0 : i32
    return %c0_i32, %c0_i32_0 : i32, i32
  }
  func.func @transform_2(%arg0: i32) -> (i32, i32) {
    %c0_i32 = arith.constant 0 : i32
    %c0_i32_0 = arith.constant 0 : i32
    %c0_i32_1 = arith.constant 0 : i32
    return %c0_i32, %c0_i32_0 : i32, i32
  }
  func.func @transform_3(%arg0: i32) -> (i32, i32) {
    %c0_i32 = arith.constant 0 : i32
    %c0_i32_0 = arith.constant 0 : i32
    %c0_i32_1 = arith.constant 0 : i32
    return %c0_i32, %c0_i32_0 : i32, i32
  }
  func.func @transform_4(%arg0: i32) -> (i32, i32) {
    %c0_i32 = arith.constant 0 : i32
    %c0_i32_0 = arith.constant 0 : i32
    %c0_i32_1 = arith.constant 0 : i32
    return %c0_i32, %c0_i32_0 : i32, i32
  }
  func.func @transform_5(%arg0: i32) -> (i32, i32) {
    %c0_i32 = arith.constant 0 : i32
    %c0_i32_0 = arith.constant 0 : i32
    %c0_i32_1 = arith.constant 0 : i32
    return %c0_i32, %c0_i32_0 : i32, i32
  }
  func.func @transform_6(%arg0: i32) -> (i32, i32) {
    %c0_i32 = arith.constant 0 : i32
    %c0_i32_0 = arith.constant 0 : i32
    %c0_i32_1 = arith.constant 0 : i32
    return %c0_i32, %c0_i32_0 : i32, i32
  }
  func.func @transform_7(%arg0: i32) -> (i32, i32) {
    %c0_i32 = arith.constant 0 : i32
    %c0_i32_0 = arith.constant 0 : i32
    return %arg0, %c0_i32 : i32, i32
  }
}

module attributes {stable_mosaic.version = 11 : i64} {
  func.func @_dense_network_kernel(%arg0: i32, %arg1: memref<8x32xf32, #tpu.memory_space<vmem>>, %arg2: memref<32x8xf32, #tpu.memory_space<vmem>>, %arg3: memref<1x8xf32, #tpu.memory_space<vmem>>, %arg4: memref<8x2xf32, #tpu.memory_space<vmem>>, %arg5: memref<1x2xf32, #tpu.memory_space<vmem>>, %arg6: memref<1x2xf32, #tpu.memory_space<vmem>>, %arg7: memref<1x1xf32, #tpu.memory_space<vmem>>, %arg8: memref<8x1xf32, #tpu.memory_space<vmem>>) attributes {dimension_semantics = [#tpu.dimension_semantics<parallel>], iteration_bounds = array<i64: 1>, scalar_prefetch = 0 : i64, scratch_operands = 0 : i64, tpu.core_type = #tpu.core_type<tc>, window_params = [{transform_indices = @transform_0, window_bounds = array<i64: 8, 32>}, {pipeline_mode = #tpu.pipeline_mode<synchronous>, transform_indices = @transform_1, window_bounds = array<i64: 32, 8>}, {pipeline_mode = #tpu.pipeline_mode<synchronous>, transform_indices = @transform_2, window_bounds = array<i64: 1, 8>}, {pipeline_mode = #tpu.pipeline_mode<synchronous>, transform_indices = @transform_3, window_bounds = array<i64: 8, 2>}, {pipeline_mode = #tpu.pipeline_mode<synchronous>, transform_indices = @transform_4, window_bounds = array<i64: 1, 2>}, {pipeline_mode = #tpu.pipeline_mode<synchronous>, transform_indices = @transform_5, window_bounds = array<i64: 1, 2>}, {pipeline_mode = #tpu.pipeline_mode<synchronous>, transform_indices = @transform_6, window_bounds = array<i64: 1, 1>}, {transform_indices = @transform_7, window_bounds = array<i64: 8, 1>}]} {
    %c0 = arith.constant 0 : index
    %c0_0 = arith.constant 0 : index
    %0 = vector.load %arg1[%c0, %c0_0] : memref<8x32xf32, #tpu.memory_space<vmem>>, vector<8x32xf32>
    %c0_1 = arith.constant 0 : index
    %c0_2 = arith.constant 0 : index
    %1 = vector.load %arg2[%c0_1, %c0_2] : memref<32x8xf32, #tpu.memory_space<vmem>>, vector<32x8xf32>
    %cst = arith.constant dense<0.000000e+00> : vector<8x8xf32>
    %2 = tpu.matmul %0, %1, %cst {dimension_numbers = #tpu.dot_dimension_numbers<[1], [0], [0], [1], [0, 0, 1, 1], [], []>} : vector<8x32xf32>, vector<32x8xf32>, vector<8x8xf32> -> vector<8x8xf32>
    %c0_3 = arith.constant 0 : index
    %c0_4 = arith.constant 0 : index
    %3 = vector.load %arg3[%c0_3, %c0_4] : memref<1x8xf32, #tpu.memory_space<vmem>>, vector<1x8xf32>
    %4 = vector.broadcast %3 : vector<1x8xf32> to vector<8x8xf32>
    %5 = arith.addf %2, %4 : vector<8x8xf32>
    %cst_5 = arith.constant 0.000000e+00 : f32
    %6 = vector.broadcast %cst_5 : f32 to vector<8x8xf32>
    %7 = arith.maximumf %5, %6 : vector<8x8xf32>
    %c0_6 = arith.constant 0 : index
    %c0_7 = arith.constant 0 : index
    %8 = vector.load %arg4[%c0_6, %c0_7] : memref<8x2xf32, #tpu.memory_space<vmem>>, vector<8x2xf32>
    %cst_8 = arith.constant dense<0.000000e+00> : vector<8x2xf32>
    %9 = tpu.matmul %7, %8, %cst_8 {dimension_numbers = #tpu.dot_dimension_numbers<[1], [0], [0], [1], [0, 0, 1, 1], [], []>} : vector<8x8xf32>, vector<8x2xf32>, vector<8x2xf32> -> vector<8x2xf32>
    %c0_9 = arith.constant 0 : index
    %c0_10 = arith.constant 0 : index
    %10 = vector.load %arg5[%c0_9, %c0_10] : memref<1x2xf32, #tpu.memory_space<vmem>>, vector<1x2xf32>
    %11 = vector.broadcast %10 : vector<1x2xf32> to vector<8x2xf32>
    %12 = arith.addf %9, %11 : vector<8x2xf32>
    %cst_11 = arith.constant 0.000000e+00 : f32
    %13 = vector.broadcast %cst_11 : f32 to vector<8x2xf32>
    %14 = arith.maximumf %12, %13 : vector<8x2xf32>
    %c0_12 = arith.constant 0 : index
    %c0_13 = arith.constant 0 : index
    %15 = vector.load %arg6[%c0_12, %c0_13] : memref<1x2xf32, #tpu.memory_space<vmem>>, vector<1x2xf32>
    %16 = vector.broadcast %15 : vector<1x2xf32> to vector<8x2xf32>
    %17 = arith.mulf %14, %16 : vector<8x2xf32>
    %cst_14 = arith.constant dense<0.000000e+00> : vector<8xf32>
    %18 = vector.multi_reduction <add>, %17, %cst_14 [1] : vector<8x2xf32> to vector<8xf32>
    %19 = vector.shape_cast %18 : vector<8xf32> to vector<8x1xf32>
    %c0_15 = arith.constant 0 : index
    %c0_16 = arith.constant 0 : index
    %20 = vector.load %arg7[%c0_15, %c0_16] : memref<1x1xf32, #tpu.memory_space<vmem>>, vector<1x1xf32>
    %21 = vector.broadcast %20 : vector<1x1xf32> to vector<8x1xf32>
    %22 = arith.addf %19, %21 : vector<8x1xf32>
    %c0_17 = arith.constant 0 : index
    %c0_18 = arith.constant 0 : index
    %23 = vector.load %arg8[%c0_17, %c0_18] : memref<8x1xf32, #tpu.memory_space<vmem>>, vector<8x1xf32>
    tpu.vector_store %arg8[%c0_17, %c0_18], %22 {strides = array<i32>} : memref<8x1xf32, #tpu.memory_space<vmem>>, vector<8x1xf32>,
    return
  }
  func.func @transform_0(%arg0: i32) -> (i32, i32) {
    %c0_i32 = arith.constant 0 : i32
    %c0_i32_0 = arith.constant 0 : i32
    return %arg0, %c0_i32 : i32, i32
  }
  func.func @transform_1(%arg0: i32) -> (i32, i32) {
    %c0_i32 = arith.constant 0 : i32
    %c0_i32_0 = arith.constant 0 : i32
    %c0_i32_1 = arith.constant 0 : i32
    return %c0_i32, %c0_i32_0 : i32, i32
  }
  func.func @transform_2(%arg0: i32) -> (i32, i32) {
    %c0_i32 = arith.constant 0 : i32
    %c0_i32_0 = arith.constant 0 : i32
    %c0_i32_1 = arith.constant 0 : i32
    return %c0_i32, %c0_i32_0 : i32, i32
  }
  func.func @transform_3(%arg0: i32) -> (i32, i32) {
    %c0_i32 = arith.constant 0 : i32
    %c0_i32_0 = arith.constant 0 : i32
    %c0_i32_1 = arith.constant 0 : i32
    return %c0_i32, %c0_i32_0 : i32, i32
  }
  func.func @transform_4(%arg0: i32) -> (i32, i32) {
    %c0_i32 = arith.constant 0 : i32
    %c0_i32_0 = arith.constant 0 : i32
    %c0_i32_1 = arith.constant 0 : i32
    return %c0_i32, %c0_i32_0 : i32, i32
  }
  func.func @transform_5(%arg0: i32) -> (i32, i32) {
    %c0_i32 = arith.constant 0 : i32
    %c0_i32_0 = arith.constant 0 : i32
    %c0_i32_1 = arith.constant 0 : i32
    return %c0_i32, %c0_i32_0 : i32, i32
  }
  func.func @transform_6(%arg0: i32) -> (i32, i32) {
    %c0_i32 = arith.constant 0 : i32
    %c0_i32_0 = arith.constant 0 : i32
    %c0_i32_1 = arith.constant 0 : i32
    return %c0_i32, %c0_i32_0 : i32, i32
  }
  func.func @transform_7(%arg0: i32) -> (i32, i32) {
    %c0_i32 = arith.constant 0 : i32
    %c0_i32_0 = arith.constant 0 : i32
    return %arg0, %c0_i32 : i32, i32
  }
}

</mosaic_0001>

<llo_original>
// kernel: tpu_custom_call.1
$region0: #{tpu_custom_call.1}
  #allocation0 [shape = 'u32[]', space=smem, size = 0x4, offset = 0x4, fixed_abs, tag = 'smem constant byte address 0x4 - core index']
  #allocation1 [shape = 'u32[144,128]{1,0:T(1,128)}', space=vmem, size = 0x12000, scoped, tag = 'internal scratch']
  #allocation2 [shape = 'f32[1,1]{1,0:T(1,128)S(1)}', space=vmem, size = 0x200, scoped, tag = 'scoped memory for tpu_custom_call.1']
  %s0 = inlined_call_operand.vmem [shape: f32[8,32], index: 0, kind: input, shape index: {}]
  %s1 = inlined_call_operand.vmem [shape: f32[32,8], index: 1, kind: input, shape index: {}]
  %s2 = inlined_call_operand.vmem [shape: f32[1,8], index: 2, kind: input, shape index: {}]
  %s3 = inlined_call_operand.vmem [shape: f32[8,2], index: 3, kind: input, shape index: {}]
  %s4 = inlined_call_operand.vmem [shape: f32[1,2], index: 4, kind: input, shape index: {}]
  %s5 = inlined_call_operand.vmem [shape: f32[1,2], index: 5, kind: input, shape index: {}]
  %s6 = inlined_call_operand.<no memory space> [shape: f32[1,1], index: 6, kind: input, shape index: {}]
  %s7 = inlined_call_operand.vmem [shape: f32[8,1], index: 7, kind: output, shape index: {}]
  %s8 = sld [smem:[#allocation0]]
  $region38: #{tpu_custom_call.1} parent=0
    _
  %s10 = ssub.s32 1, %s8
  %s11 = scalar_select 0, %s10, %s8
  %v12 = vstv %s6
  %13 = vst [vmem:[#allocation2] sm:$0x1] %v12
  // Predicated region
  $region2: #{tpu_custom_call.1} parent=0 // pred_check
    _
  $region3: #{tpu_custom_call.1} parent=0 // pred_check_branch
    %15 = sbr.rel (0) target = $region5
  $region4: #{tpu_custom_call.1} parent=0 // pred_region
    _
  $region5: #{tpu_custom_call.1} parent=0 // pred_fallthru
    _
  // Predicated region
  $region6: #{tpu_custom_call.1} parent=0 // pred_check
    _
  $region7: #{tpu_custom_call.1} parent=0 // pred_check_branch
    %17 = sbr.rel (0) target = $region9
  $region8: #{tpu_custom_call.1} parent=0 // pred_region
    _
  $region9: #{tpu_custom_call.1} parent=0 // pred_fallthru
    _
  // Predicated region
  $region10: #{tpu_custom_call.1} parent=0 // pred_check
    _
  $region11: #{tpu_custom_call.1} parent=0 // pred_check_branch
    %19 = sbr.rel (0) target = $region13
  $region12: #{tpu_custom_call.1} parent=0 // pred_region
    _
  $region13: #{tpu_custom_call.1} parent=0 // pred_fallthru
    _
  // Predicated region
  $region14: #{tpu_custom_call.1} parent=0 // pred_check
    _
  $region15: #{tpu_custom_call.1} parent=0 // pred_check_branch
    %21 = sbr.rel (0) target = $region17
  $region16: #{tpu_custom_call.1} parent=0 // pred_region
    _
  $region17: #{tpu_custom_call.1} parent=0 // pred_fallthru
    _
  // Predicated region
  $region18: #{tpu_custom_call.1} parent=0 // pred_check
    _
  $region19: #{tpu_custom_call.1} parent=0 // pred_check_branch
    %23 = sbr.rel (0) target = $region21
  $region20: #{tpu_custom_call.1} parent=0 // pred_region
    _
  $region21: #{tpu_custom_call.1} parent=0 // pred_fallthru
    _
  // Predicated region
  $region22: #{tpu_custom_call.1} parent=0 // pred_check
    _
  $region23: #{tpu_custom_call.1} parent=0 // pred_check_branch
    %25 = sbr.rel (0) target = $region25
  $region24: #{tpu_custom_call.1} parent=0 // pred_region
    _
  $region25: #{tpu_custom_call.1} parent=0 // pred_fallthru
    _
  // Predicated region
  $region26: #{tpu_custom_call.1} parent=0 // pred_check
    _
  $region27: #{tpu_custom_call.1} parent=0 // pred_check_branch
    %27 = sbr.rel (0) target = $region29
  $region28: #{tpu_custom_call.1} parent=0 // pred_region
    _
  $region29: #{tpu_custom_call.1} parent=0 // pred_fallthru
    _
  %v28 = vld [vmem:[%s0] sm:$0xff]
  %v29 = vld [vmem:[%s1] sm:$0xff]
  %v30 = vld [vmem:[%s1 + $0x8] sm:$0xff]
  %v31 = vld [vmem:[%s1 + $0x10] sm:$0xff]
  %v32 = vld [vmem:[%s1 + $0x18] sm:$0xff]
  %v33 = vld [vmem:[%s2] sm:$0x1]
  %v35 = vlaneseq
  %v36 = vshrl.u32 %v35, 7
  %v37 = vsub.s32 0, %v36
  %v38 = vrot.slane %v33, %v37
  %vm40 = vcmask 261120
  %v42 = vsel %vm40, %v28, 0
  %44 = vmatprep.subr.mxu0 0.0
  %45 = vmatpush1.msra.mxu0 %v29
  %46 = vmatprep.subr.mxu0 0.0
  %47 = vmatpush1.msra.mxu0 %v30
  %48 = vmatprep.subr.mxu0 0.0
  %49 = vmatpush1.msra.mxu0 %v31
  %50 = vmatprep.subr.mxu0 0.0
  %51 = vmatpush1.msra.mxu0 %v32
  %52 = vmatprep.subr.mxu0 0.0
  %53 = vmatpush1.msra.mxu0 0.0
  %54 = vmatprep.subr.mxu0 0.0
  %55 = vmatpush1.msra.mxu0 0.0
  %56 = vmatprep.subr.mxu0 0.0
  %57 = vmatpush1.msra.mxu0 0.0
  %58 = vmatprep.subr.mxu0 0.0
  %59 = vmatpush1.msra.mxu0 0.0
  %60 = vmatprep.subr.mxu0 0.0
  %61 = vmatpush1.msra.mxu0 0.0
  %62 = vmatprep.subr.mxu0 0.0
  %63 = vmatpush1.msra.mxu0 0.0
  %64 = vmatprep.subr.mxu0 0.0
  %65 = vmatpush1.msra.mxu0 0.0
  %66 = vmatprep.subr.mxu0 0.0
  %67 = vmatpush1.msra.mxu0 0.0
  %68 = vmatprep.subr.mxu0 0.0
  %69 = vmatpush1.msra.mxu0 0.0
  %70 = vmatprep.subr.mxu0 0.0
  %71 = vmatpush1.msra.mxu0 0.0
  %72 = vmatprep.subr.mxu0 0.0
  %73 = vmatpush1.msra.mxu0 0.0
  %74 = vmatprep.subr.mxu0 0.0
  %75 = vmatpush1.msra.mxu0 0.0
  %76 = vmatprep.subr.mxu0 0.0
  %77 = vmatpush1.msra.mxu0 0.0
  %78 = vmatprep.subr.mxu0 0.0
  %79 = vmatpush1.msra.mxu0 0.0
  %80 = vmatprep.subr.mxu0 0.0
  %81 = vmatpush1.msra.mxu0 0.0
  %82 = vmatprep.subr.mxu0 0.0
  %83 = vmatpush1.msra.mxu0 0.0
  %84 = vmatprep.subr.mxu0 0.0
  %85 = vmatpush1.msra.mxu0 0.0
  %86 = vmatprep.subr.mxu0 0.0
  %87 = vmatpush1.msra.mxu0 0.0
  %88 = vmatprep.subr.mxu0 0.0
  %89 = vmatpush1.msra.mxu0 0.0
  %90 = vmatprep.subr.mxu0 0.0
  %91 = vmatpush1.msra.mxu0 0.0
  %92 = vmatprep.subr.mxu0 0.0
  %93 = vmatpush1.msra.mxu0 0.0
  %94 = vmatprep.subr.mxu0 0.0
  %95 = vmatpush1.msra.mxu0 0.0
  %96 = vmatprep.subr.mxu0 0.0
  %97 = vmatpush1.msra.mxu0 0.0
  %98 = vmatprep.subr.mxu0 0.0
  %99 = vmatpush1.msra.mxu0 0.0
  %100 = vmatprep.subr.mxu0 0.0
  %101 = vmatpush1.msra.mxu0 0.0
  %102 = vmatprep.subr.mxu0 0.0
  %103 = vmatpush1.msra.mxu0 0.0
  %104 = vmatprep.subr.mxu0 0.0
  %105 = vmatpush1.msra.mxu0 0.0
  %106 = vmatprep.subr.mxu0 0.0
  %107 = vmatpush1.msra.mxu0 0.0
  %108 = vmatprep.mubr.f32.mxu0 0.0
  %109 = vmatmul.mubr.f32.gmra.mrb[0].mxu0 %v42
  %v110 = vpop.f32.mrb[0].mxu0
  %v111 = vadd.f32 %v38, %v110
  %v112 = vpop.f32.mrb[0].mxu0
  %113 = vdwg.mxu0
  %v114 = vmax.f32 %v111, 0.0
  %v115 = vld [vmem:[%s3] sm:$0xff]
  %v116 = vld [vmem:[%s4] sm:$0x1]
  %v118 = vlaneseq
  %v119 = vshrl.u32 %v118, 7
  %v120 = vsub.s32 0, %v119
  %v121 = vrot.slane %v116, %v120
  %vm123 = vcmask 64512
  %v125 = vsel %vm123, %v114, 0
  %127 = vmatprep.subr.mxu0 0.0
  %128 = vmatpush1.msra.mxu0 %v115
  %129 = vmatprep.subr.mxu0 0.0
  %130 = vmatpush1.msra.mxu0 0.0
  %131 = vmatprep.subr.mxu0 0.0
  %132 = vmatpush1.msra.mxu0 0.0
  %133 = vmatprep.subr.mxu0 0.0
  %134 = vmatpush1.msra.mxu0 0.0
  %135 = vmatprep.subr.mxu0 0.0
  %136 = vmatpush1.msra.mxu0 0.0
  %137 = vmatprep.subr.mxu0 0.0
  %138 = vmatpush1.msra.mxu0 0.0
  %139 = vmatprep.subr.mxu0 0.0
  %140 = vmatpush1.msra.mxu0 0.0
  %141 = vmatprep.subr.mxu0 0.0
  %142 = vmatpush1.msra.mxu0 0.0
  %143 = vmatprep.subr.mxu0 0.0
  %144 = vmatpush1.msra.mxu0 0.0
  %145 = vmatprep.subr.mxu0 0.0
  %146 = vmatpush1.msra.mxu0 0.0
  %147 = vmatprep.subr.mxu0 0.0
  %148 = vmatpush1.msra.mxu0 0.0
  %149 = vmatprep.subr.mxu0 0.0
  %150 = vmatpush1.msra.mxu0 0.0
  %151 = vmatprep.subr.mxu0 0.0
  %152 = vmatpush1.msra.mxu0 0.0
  %153 = vmatprep.subr.mxu0 0.0
  %154 = vmatpush1.msra.mxu0 0.0
  %155 = vmatprep.subr.mxu0 0.0
  %156 = vmatpush1.msra.mxu0 0.0
  %157 = vmatprep.subr.mxu0 0.0
  %158 = vmatpush1.msra.mxu0 0.0
  %159 = vmatprep.subr.mxu0 0.0
  %160 = vmatpush1.msra.mxu0 0.0
  %161 = vmatprep.subr.mxu0 0.0
  %162 = vmatpush1.msra.mxu0 0.0
  %163 = vmatprep.subr.mxu0 0.0
  %164 = vmatpush1.msra.mxu0 0.0
  %165 = vmatprep.subr.mxu0 0.0
  %166 = vmatpush1.msra.mxu0 0.0
  %167 = vmatprep.subr.mxu0 0.0
  %168 = vmatpush1.msra.mxu0 0.0
  %169 = vmatprep.subr.mxu0 0.0
  %170 = vmatpush1.msra.mxu0 0.0
  %171 = vmatprep.subr.mxu0 0.0
  %172 = vmatpush1.msra.mxu0 0.0
  %173 = vmatprep.subr.mxu0 0.0
  %174 = vmatpush1.msra.mxu0 0.0
  %175 = vmatprep.subr.mxu0 0.0
  %176 = vmatpush1.msra.mxu0 0.0
  %177 = vmatprep.subr.mxu0 0.0
  %178 = vmatpush1.msra.mxu0 0.0
  %179 = vmatprep.subr.mxu0 0.0
  %180 = vmatpush1.msra.mxu0 0.0
  %181 = vmatprep.subr.mxu0 0.0
  %182 = vmatpush1.msra.mxu0 0.0
  %183 = vmatprep.subr.mxu0 0.0
  %184 = vmatpush1.msra.mxu0 0.0
  %185 = vmatprep.subr.mxu0 0.0
  %186 = vmatpush1.msra.mxu0 0.0
  %187 = vmatprep.subr.mxu0 0.0
  %188 = vmatpush1.msra.mxu0 0.0
  %189 = vmatprep.subr.mxu0 0.0
  %190 = vmatpush1.msra.mxu0 0.0
  %191 = vmatprep.mubr.f32.mxu0 0.0
  %192 = vmatmul.mubr.f32.gmra.mrb[0].mxu0 %v125
  %v193 = vpop.f32.mrb[0].mxu0
  %v194 = vadd.f32 %v121, %v193
  %v195 = vpop.f32.mrb[0].mxu0
  %196 = vdwg.mxu0
  %v197 = vmax.f32 %v194, 0.0
  %v198 = vld [vmem:[%s5] sm:$0x1]
  %v200 = vlaneseq
  %v201 = vshrl.u32 %v200, 7
  %v202 = vsub.s32 0, %v201
  %v203 = vrot.slane %v198, %v202
  %v205 = vmul.f32 %v197, %v203
  %vm206 = vcmask 15360
  %v207 = vsel %vm206, %v205, 0.0
  %208 = vadd.xlane.f32.xlu0 %v207
  %v209 = vpop.xlane.xlu0 %208
  %v210 = vld [vmem:[#allocation2] sm:$0x1]
  %v212 = vlaneseq
  %v213 = vshrl.u32 %v212, 7
  %v214 = vsub.s32 0, %v213
  %v215 = vrot.slane %v210, %v214
  %v217 = vadd.f32 %v209, %v215
  %vm218 = vcmask 7168
  %219 = vst.msk [vmem:[%s7] sm:$0xff] %vm218, %v217
  // Predicated region
  $region30: #{tpu_custom_call.1} parent=0 // pred_check
    _
  $region31: #{tpu_custom_call.1} parent=0 // pred_check_branch
    %221 = sbr.rel (0) target = $region33
  $region32: #{tpu_custom_call.1} parent=0 // pred_region
    _
  $region33: #{tpu_custom_call.1} parent=0 // pred_fallthru
    _
  // Predicated region
  $region34: #{tpu_custom_call.1} parent=0 // pred_check
    _
  $region35: #{tpu_custom_call.1} parent=0 // pred_check_branch
    %223 = sbr.rel (0) target = $region37
  $region36: #{tpu_custom_call.1} parent=0 // pred_region
    _
  $region37: #{tpu_custom_call.1} parent=0 // pred_fallthru
    _

// kernel: tpu_custom_call.1
$region0: #{tpu_custom_call.1}
  #allocation0 [shape = 'u32[]', space=smem, size = 0x4, offset = 0x4, fixed_abs, tag = 'smem constant byte address 0x4 - core index']
  #allocation1 [shape = 'u32[144,128]{1,0:T(1,128)}', space=vmem, size = 0x12000, scoped, tag = 'internal scratch']
  #allocation2 [shape = 'f32[1,1]{1,0:T(1,128)S(1)}', space=vmem, size = 0x200, scoped, tag = 'scoped memory for tpu_custom_call.1']
  %s0 = inlined_call_operand.vmem [shape: f32[8,32], index: 0, kind: input, shape index: {}]
  %s1 = inlined_call_operand.vmem [shape: f32[32,8], index: 1, kind: input, shape index: {}]
  %s2 = inlined_call_operand.vmem [shape: f32[1,8], index: 2, kind: input, shape index: {}]
  %s3 = inlined_call_operand.vmem [shape: f32[8,2], index: 3, kind: input, shape index: {}]
  %s4 = inlined_call_operand.vmem [shape: f32[1,2], index: 4, kind: input, shape index: {}]
  %s5 = inlined_call_operand.vmem [shape: f32[1,2], index: 5, kind: input, shape index: {}]
  %s6 = inlined_call_operand.<no memory space> [shape: f32[1,1], index: 6, kind: input, shape index: {}]
  %s7 = inlined_call_operand.vmem [shape: f32[8,1], index: 7, kind: output, shape index: {}]
  %s8 = sld [smem:[#allocation0]]
  $region38: #{tpu_custom_call.1} parent=0
    _
  %s10 = ssub.s32 1, %s8
  %s11 = scalar_select 0, %s10, %s8
  %v12 = vstv %s6
  %13 = vst [vmem:[#allocation2] sm:$0x1] %v12
  // Predicated region
  $region2: #{tpu_custom_call.1} parent=0 // pred_check
    _
  $region3: #{tpu_custom_call.1} parent=0 // pred_check_branch
    %15 = sbr.rel (0) target = $region5
  $region4: #{tpu_custom_call.1} parent=0 // pred_region
    _
  $region5: #{tpu_custom_call.1} parent=0 // pred_fallthru
    _
  // Predicated region
  $region6: #{tpu_custom_call.1} parent=0 // pred_check
    _
  $region7: #{tpu_custom_call.1} parent=0 // pred_check_branch
    %17 = sbr.rel (0) target = $region9
  $region8: #{tpu_custom_call.1} parent=0 // pred_region
    _
  $region9: #{tpu_custom_call.1} parent=0 // pred_fallthru
    _
  // Predicated region
  $region10: #{tpu_custom_call.1} parent=0 // pred_check
    _
  $region11: #{tpu_custom_call.1} parent=0 // pred_check_branch
    %19 = sbr.rel (0) target = $region13
  $region12: #{tpu_custom_call.1} parent=0 // pred_region
    _
  $region13: #{tpu_custom_call.1} parent=0 // pred_fallthru
    _
  // Predicated region
  $region14: #{tpu_custom_call.1} parent=0 // pred_check
    _
  $region15: #{tpu_custom_call.1} parent=0 // pred_check_branch
    %21 = sbr.rel (0) target = $region17
  $region16: #{tpu_custom_call.1} parent=0 // pred_region
    _
  $region17: #{tpu_custom_call.1} parent=0 // pred_fallthru
    _
  // Predicated region
  $region18: #{tpu_custom_call.1} parent=0 // pred_check
    _
  $region19: #{tpu_custom_call.1} parent=0 // pred_check_branch
    %23 = sbr.rel (0) target = $region21
  $region20: #{tpu_custom_call.1} parent=0 // pred_region
    _
  $region21: #{tpu_custom_call.1} parent=0 // pred_fallthru
    _
  // Predicated region
  $region22: #{tpu_custom_call.1} parent=0 // pred_check
    _
  $region23: #{tpu_custom_call.1} parent=0 // pred_check_branch
    %25 = sbr.rel (0) target = $region25
  $region24: #{tpu_custom_call.1} parent=0 // pred_region
    _
  $region25: #{tpu_custom_call.1} parent=0 // pred_fallthru
    _
  // Predicated region
  $region26: #{tpu_custom_call.1} parent=0 // pred_check
    _
  $region27: #{tpu_custom_call.1} parent=0 // pred_check_branch
    %27 = sbr.rel (0) target = $region29
  $region28: #{tpu_custom_call.1} parent=0 // pred_region
    _
  $region29: #{tpu_custom_call.1} parent=0 // pred_fallthru
    _
  %v28 = vld [vmem:[%s0] sm:$0xff]
  %v29 = vld [vmem:[%s1] sm:$0xff]
  %v30 = vld [vmem:[%s1 + $0x8] sm:$0xff]
  %v31 = vld [vmem:[%s1 + $0x10] sm:$0xff]
  %v32 = vld [vmem:[%s1 + $0x18] sm:$0xff]
  %v33 = vld [vmem:[%s2] sm:$0x1]
  %v35 = vlaneseq
  %v36 = vshrl.u32 %v35, 7
  %v37 = vsub.s32 0, %v36
  %v38 = vrot.slane %v33, %v37
  %vm40 = vcmask 261120
  %v42 = vsel %vm40, %v28, 0
  %44 = vmatprep.subr.mxu0 0.0
  %45 = vmatpush1.msra.mxu0 %v29
  %46 = vmatprep.subr.mxu0 0.0
  %47 = vmatpush1.msra.mxu0 %v30
  %48 = vmatprep.subr.mxu0 0.0
  %49 = vmatpush1.msra.mxu0 %v31
  %50 = vmatprep.subr.mxu0 0.0
  %51 = vmatpush1.msra.mxu0 %v32
  %52 = vmatprep.subr.mxu0 0.0
  %53 = vmatpush1.msra.mxu0 0.0
  %54 = vmatprep.subr.mxu0 0.0
  %55 = vmatpush1.msra.mxu0 0.0
  %56 = vmatprep.subr.mxu0 0.0
  %57 = vmatpush1.msra.mxu0 0.0
  %58 = vmatprep.subr.mxu0 0.0
  %59 = vmatpush1.msra.mxu0 0.0
  %60 = vmatprep.subr.mxu0 0.0
  %61 = vmatpush1.msra.mxu0 0.0
  %62 = vmatprep.subr.mxu0 0.0
  %63 = vmatpush1.msra.mxu0 0.0
  %64 = vmatprep.subr.mxu0 0.0
  %65 = vmatpush1.msra.mxu0 0.0
  %66 = vmatprep.subr.mxu0 0.0
  %67 = vmatpush1.msra.mxu0 0.0
  %68 = vmatprep.subr.mxu0 0.0
  %69 = vmatpush1.msra.mxu0 0.0
  %70 = vmatprep.subr.mxu0 0.0
  %71 = vmatpush1.msra.mxu0 0.0
  %72 = vmatprep.subr.mxu0 0.0
  %73 = vmatpush1.msra.mxu0 0.0
  %74 = vmatprep.subr.mxu0 0.0
  %75 = vmatpush1.msra.mxu0 0.0
  %76 = vmatprep.subr.mxu0 0.0
  %77 = vmatpush1.msra.mxu0 0.0
  %78 = vmatprep.subr.mxu0 0.0
  %79 = vmatpush1.msra.mxu0 0.0
  %80 = vmatprep.subr.mxu0 0.0
  %81 = vmatpush1.msra.mxu0 0.0
  %82 = vmatprep.subr.mxu0 0.0
  %83 = vmatpush1.msra.mxu0 0.0
  %84 = vmatprep.subr.mxu0 0.0
  %85 = vmatpush1.msra.mxu0 0.0
  %86 = vmatprep.subr.mxu0 0.0
  %87 = vmatpush1.msra.mxu0 0.0
  %88 = vmatprep.subr.mxu0 0.0
  %89 = vmatpush1.msra.mxu0 0.0
  %90 = vmatprep.subr.mxu0 0.0
  %91 = vmatpush1.msra.mxu0 0.0
  %92 = vmatprep.subr.mxu0 0.0
  %93 = vmatpush1.msra.mxu0 0.0
  %94 = vmatprep.subr.mxu0 0.0
  %95 = vmatpush1.msra.mxu0 0.0
  %96 = vmatprep.subr.mxu0 0.0
  %97 = vmatpush1.msra.mxu0 0.0
  %98 = vmatprep.subr.mxu0 0.0
  %99 = vmatpush1.msra.mxu0 0.0
  %100 = vmatprep.subr.mxu0 0.0
  %101 = vmatpush1.msra.mxu0 0.0
  %102 = vmatprep.subr.mxu0 0.0
  %103 = vmatpush1.msra.mxu0 0.0
  %104 = vmatprep.subr.mxu0 0.0
  %105 = vmatpush1.msra.mxu0 0.0
  %106 = vmatprep.subr.mxu0 0.0
  %107 = vmatpush1.msra.mxu0 0.0
  %108 = vmatprep.mubr.f32.mxu0 0.0
  %109 = vmatmul.mubr.f32.gmra.mrb[0].mxu0 %v42
  %v110 = vpop.f32.mrb[0].mxu0
  %v111 = vadd.f32 %v38, %v110
  %v112 = vpop.f32.mrb[0].mxu0
  %113 = vdwg.mxu0
  %v114 = vmax.f32 %v111, 0.0
  %v115 = vld [vmem:[%s3] sm:$0xff]
  %v116 = vld [vmem:[%s4] sm:$0x1]
  %v118 = vlaneseq
  %v119 = vshrl.u32 %v118, 7
  %v120 = vsub.s32 0, %v119
  %v121 = vrot.slane %v116, %v120
  %vm123 = vcmask 64512
  %v125 = vsel %vm123, %v114, 0
  %127 = vmatprep.subr.mxu0 0.0
  %128 = vmatpush1.msra.mxu0 %v115
  %129 = vmatprep.subr.mxu0 0.0
  %130 = vmatpush1.msra.mxu0 0.0
  %131 = vmatprep.subr.mxu0 0.0
  %132 = vmatpush1.msra.mxu0 0.0
  %133 = vmatprep.subr.mxu0 0.0
  %134 = vmatpush1.msra.mxu0 0.0
  %135 = vmatprep.subr.mxu0 0.0
  %136 = vmatpush1.msra.mxu0 0.0
  %137 = vmatprep.subr.mxu0 0.0
  %138 = vmatpush1.msra.mxu0 0.0
  %139 = vmatprep.subr.mxu0 0.0
  %140 = vmatpush1.msra.mxu0 0.0
  %141 = vmatprep.subr.mxu0 0.0
  %142 = vmatpush1.msra.mxu0 0.0
  %143 = vmatprep.subr.mxu0 0.0
  %144 = vmatpush1.msra.mxu0 0.0
  %145 = vmatprep.subr.mxu0 0.0
  %146 = vmatpush1.msra.mxu0 0.0
  %147 = vmatprep.subr.mxu0 0.0
  %148 = vmatpush1.msra.mxu0 0.0
  %149 = vmatprep.subr.mxu0 0.0
  %150 = vmatpush1.msra.mxu0 0.0
  %151 = vmatprep.subr.mxu0 0.0
  %152 = vmatpush1.msra.mxu0 0.0
  %153 = vmatprep.subr.mxu0 0.0
  %154 = vmatpush1.msra.mxu0 0.0
  %155 = vmatprep.subr.mxu0 0.0
  %156 = vmatpush1.msra.mxu0 0.0
  %157 = vmatprep.subr.mxu0 0.0
  %158 = vmatpush1.msra.mxu0 0.0
  %159 = vmatprep.subr.mxu0 0.0
  %160 = vmatpush1.msra.mxu0 0.0
  %161 = vmatprep.subr.mxu0 0.0
  %162 = vmatpush1.msra.mxu0 0.0
  %163 = vmatprep.subr.mxu0 0.0
  %164 = vmatpush1.msra.mxu0 0.0
  %165 = vmatprep.subr.mxu0 0.0
  %166 = vmatpush1.msra.mxu0 0.0
  %167 = vmatprep.subr.mxu0 0.0
  %168 = vmatpush1.msra.mxu0 0.0
  %169 = vmatprep.subr.mxu0 0.0
  %170 = vmatpush1.msra.mxu0 0.0
  %171 = vmatprep.subr.mxu0 0.0
  %172 = vmatpush1.msra.mxu0 0.0
  %173 = vmatprep.subr.mxu0 0.0
  %174 = vmatpush1.msra.mxu0 0.0
  %175 = vmatprep.subr.mxu0 0.0
  %176 = vmatpush1.msra.mxu0 0.0
  %177 = vmatprep.subr.mxu0 0.0
  %178 = vmatpush1.msra.mxu0 0.0
  %179 = vmatprep.subr.mxu0 0.0
  %180 = vmatpush1.msra.mxu0 0.0
  %181 = vmatprep.subr.mxu0 0.0
  %182 = vmatpush1.msra.mxu0 0.0
  %183 = vmatprep.subr.mxu0 0.0
  %184 = vmatpush1.msra.mxu0 0.0
  %185 = vmatprep.subr.mxu0 0.0
  %186 = vmatpush1.msra.mxu0 0.0
  %187 = vmatprep.subr.mxu0 0.0
  %188 = vmatpush1.msra.mxu0 0.0
  %189 = vmatprep.subr.mxu0 0.0
  %190 = vmatpush1.msra.mxu0 0.0
  %191 = vmatprep.mubr.f32.mxu0 0.0
  %192 = vmatmul.mubr.f32.gmra.mrb[0].mxu0 %v125
  %v193 = vpop.f32.mrb[0].mxu0
  %v194 = vadd.f32 %v121, %v193
  %v195 = vpop.f32.mrb[0].mxu0
  %196 = vdwg.mxu0
  %v197 = vmax.f32 %v194, 0.0
  %v198 = vld [vmem:[%s5] sm:$0x1]
  %v200 = vlaneseq
  %v201 = vshrl.u32 %v200, 7
  %v202 = vsub.s32 0, %v201
  %v203 = vrot.slane %v198, %v202
  %v205 = vmul.f32 %v197, %v203
  %vm206 = vcmask 15360
  %v207 = vsel %vm206, %v205, 0.0
  %208 = vadd.xlane.f32.xlu0 %v207
  %v209 = vpop.xlane.xlu0 %208
  %v210 = vld [vmem:[#allocation2] sm:$0x1]
  %v212 = vlaneseq
  %v213 = vshrl.u32 %v212, 7
  %v214 = vsub.s32 0, %v213
  %v215 = vrot.slane %v210, %v214
  %v217 = vadd.f32 %v209, %v215
  %vm218 = vcmask 7168
  %219 = vst.msk [vmem:[%s7] sm:$0xff] %vm218, %v217
  // Predicated region
  $region30: #{tpu_custom_call.1} parent=0 // pred_check
    _
  $region31: #{tpu_custom_call.1} parent=0 // pred_check_branch
    %221 = sbr.rel (0) target = $region33
  $region32: #{tpu_custom_call.1} parent=0 // pred_region
    _
  $region33: #{tpu_custom_call.1} parent=0 // pred_fallthru
    _
  // Predicated region
  $region34: #{tpu_custom_call.1} parent=0 // pred_check
    _
  $region35: #{tpu_custom_call.1} parent=0 // pred_check_branch
    %223 = sbr.rel (0) target = $region37
  $region36: #{tpu_custom_call.1} parent=0 // pred_region
    _
  $region37: #{tpu_custom_call.1} parent=0 // pred_fallthru
    _

</llo_original>
